<compile_context>
chip_gen: v5e
topology: v5e:2x2
jax: 0.10.0
libtpu: 0.0.40
codegen_flags: <defaults>
</compile_context>

<pallas_src>
import jax
import jax.numpy as jnp
from jax.experimental import pallas as pl
from jax.experimental.pallas import tpu as pltpu


def _mlp_kernel(x_ref, w1_ref, b1_ref, w2_ref, b2_ref, o_ref):
    # Hidden layer: MXU matmul (tb, n_in) @ (n_in, n_hid); accumulate in f32
    # regardless of the operand dtype (f32 or bf16 feed).
    h = jnp.dot(x_ref[...], w1_ref[...], preferred_element_type=jnp.float32)
    # Bias + ReLU on the VPU, in f32 (v5e-safe: no bf16 vector ops emitted).
    h = jnp.maximum(h + b1_ref[...], 0.0)
    # Output layer (out_features == 1): skip the MXU — VPU multiply against the
    # f32 (1, n_hidden) weight row, XLU lane reduction, scalar bias from SMEM.
    y = jnp.sum(h * w2_ref[...], axis=-1, keepdims=True) + b2_ref[0, 0]
    o_ref[...] = y.astype(o_ref.dtype)


def _round_down8(v):
    return max(8, (v // 8) * 8)


def _round_up8(v):
    return ((v + 7) // 8) * 8


def deep_net_relu(x, w1, b1, w2_row, b2, *, tb=None, use_bf16_inputs=False):
    """Fused forward pass of DeepNetReLU.

    x      : (B, n_inputs) float32
    w1     : (n_inputs, n_hidden) float32   (torch in_layer.weight.T)
    b1     : (1, n_hidden) float32
    w2_row : (1, n_hidden) float32          (torch out_layer.weight, unchanged)
    b2     : (1, 1) float32
    returns (B, 1) float32
    """
    B, n_in = x.shape
    n_hid = w1.shape[1]
    out_dtype = x.dtype

    # Optional bf16 feed for the streamed/matmul operands only; epilogue stays f32.
    if use_bf16_inputs:
        x = x.astype(jnp.bfloat16)
        w1 = w1.astype(jnp.bfloat16)
    itemsize = jnp.dtype(x.dtype).itemsize

    # --- Batch tile selection -------------------------------------------------
    if tb is None:
        # Budget the working set under ~12 MiB: safe vs. v5e's 16 MiB scoped
        # default and leaves pipelining headroom on v6e/v7x.
        budget = 12 * 1024 * 1024
        resident = n_in * n_hid * itemsize + 2 * n_hid * 4 + 128  # w1 + b1 + w2 + slack
        per_row = 2 * n_in * itemsize + 2 * 1 * 4                 # x dbl-buf + out dbl-buf
        cap = max(8, (budget - resident) // max(per_row, 1))
        tb = min(4096, _round_down8(cap))
        # Guarantee >= 2 tiles when B allows it so v7x's two TensorCores both
        # get work along the "parallel" batch axis.
        if B >= 16:
            tb = min(tb, _round_up8((B + 1) // 2))
    # Respect the (8, 128) sublane constraint: tb multiple of 8, or the full batch.
    if tb >= B:
        tb = B
    else:
        tb = _round_down8(tb)

    num_tiles = pl.cdiv(B, tb)  # ragged last block is fine: rows are independent,
    #                             OOB reads are garbage-in-garbage-rows, OOB writes masked.

    rows_eff = num_tiles * tb
    cost = pl.CostEstimate(
        flops=2 * rows_eff * n_in * n_hid + 3 * rows_eff * n_hid,
        transcendentals=0,
        bytes_accessed=(itemsize * rows_eff * n_in
                        + itemsize * n_in * n_hid
                        + 4 * (2 * n_hid + 1 + rows_eff)),
    )

    resident_mode = pl.Buffered(1)  # constant index_map -> never re-fetched

    out = pl.pallas_call(
        _mlp_kernel,
        out_shape=jax.ShapeDtypeStruct((B, 1), out_dtype),
        grid_spec=pl.GridSpec(
            grid=(num_tiles,),
            in_specs=[
                # streamed batch tiles of x (double-buffered by default)
                pl.BlockSpec((tb, n_in), lambda i: (i, 0)),
                # resident weights / biases: constant index_map, single buffer
                pl.BlockSpec((n_in, n_hid), lambda i: (0, 0), pipeline_mode=resident_mode),
                pl.BlockSpec((1, n_hid), lambda i: (0, 0), pipeline_mode=resident_mode),
                pl.BlockSpec((1, n_hid), lambda i: (0, 0), pipeline_mode=resident_mode),
                # scalar output bias in SMEM (no padded VMEM tile / DMA)
                pl.BlockSpec(memory_space=pltpu.MemorySpace.SMEM),
            ],
            # TODO(synk): emit a lane-dense (num_tiles, tb) output slab instead of
            # a 1-lane column if output stores ever show up in a profile.
            out_specs=pl.BlockSpec((tb, 1), lambda i: (i, 0)),
        ),
        compiler_params=pltpu.CompilerParams(
            dimension_semantics=("parallel",),  # batch tiles shard across TCs on v7x
        ),
        cost_estimate=cost,
    )(x, w1, b1, w2_row, b2)

    return out


def init_params(key, n_inputs, n_hidden):
    """Deterministic init matching torch.nn.Linear's U(-1/sqrt(fan_in), +1/sqrt(fan_in))."""
    k1, k2, k3, k4 = jax.random.split(key, 4)
    bound1 = 1.0 / jnp.sqrt(n_inputs)
    bound2 = 1.0 / jnp.sqrt(n_hidden)
    w1 = jax.random.uniform(k1, (n_inputs, n_hidden), jnp.float32, -bound1, bound1)
    b1 = jax.random.uniform(k2, (1, n_hidden), jnp.float32, -bound1, bound1)
    w2 = jax.random.uniform(k3, (1, n_hidden), jnp.float32, -bound2, bound2)
    b2 = jax.random.uniform(k4, (1, 1), jnp.float32, -bound2, bound2)
    return w1, b1, w2, b2


if __name__ == "__main__":
    key = jax.random.PRNGKey(0)
    kx, kp = jax.random.split(key)

    B, n_inputs, n_hidden = 512, 32, 32
    x = jax.random.normal(kx, (B, n_inputs), jnp.float32)
    w1, b1, w2, b2 = init_params(kp, n_inputs, n_hidden)

    # 1) auto tile -> tb=256, grid=2 (exercises the parallel/megacore path)
    y = deep_net_relu(x, w1, b1, w2, b2)
    jax.block_until_ready(y)
    y_ref = jnp.maximum(x @ w1 + b1, 0.0) @ w2.T + b2
    assert y.shape == (B, 1)
    assert jnp.allclose(y, y_ref, atol=1e-4, rtol=1e-4)

    # 2) ragged batch (no jnp.pad copy): boundary block reads junk rows, output
    #    writes for them are masked, valid rows are exact.
    B2 = 500
    x2 = x[:B2]
    y2 = deep_net_relu(x2, w1, b1, w2, b2, tb=128)
    jax.block_until_ready(y2)
    y2_ref = jnp.maximum(x2 @ w1 + b1, 0.0) @ w2.T + b2
    assert y2.shape == (B2, 1)
    assert jnp.allclose(y2, y2_ref, atol=1e-4, rtol=1e-4)

    # 3) bf16 feed (halves x HBM traffic on v6e/v7x); epilogue stays f32.
    y3 = deep_net_relu(x, w1, b1, w2, b2, use_bf16_inputs=True)
    jax.block_until_ready(y3)
    assert y3.shape == (B, 1)
    assert jnp.allclose(y3, y_ref, atol=5e-2, rtol=5e-2)

    print("KERNEL_OK")
</pallas_src>

<mosaic_0001>
module attributes {stable_mosaic.version = 11 : i64} {
  func.func @_mlp_kernel(%arg0: i32, %arg1: memref<256x32xf32, #tpu.memory_space<vmem>>, %arg2: memref<32x32xf32, #tpu.memory_space<vmem>>, %arg3: memref<1x32xf32, #tpu.memory_space<vmem>>, %arg4: memref<1x32xf32, #tpu.memory_space<vmem>>, %arg5: memref<1x1xf32, #tpu.memory_space<smem>>, %arg6: memref<256x1xf32, #tpu.memory_space<vmem>>) attributes {dimension_semantics = [#tpu.dimension_semantics<parallel>], iteration_bounds = array<i64: 2>, scalar_prefetch = 0 : i64, scratch_operands = 0 : i64, tpu.core_type = #tpu.core_type<tc>, window_params = [{transform_indices = @transform_0, window_bounds = array<i64: 256, 32>}, {pipeline_mode = #tpu.pipeline_mode<synchronous>, transform_indices = @transform_1, window_bounds = array<i64: 32, 32>}, {pipeline_mode = #tpu.pipeline_mode<synchronous>, transform_indices = @transform_2, window_bounds = array<i64: 1, 32>}, {pipeline_mode = #tpu.pipeline_mode<synchronous>, transform_indices = @transform_3, window_bounds = array<i64: 1, 32>}, {transform_indices = @transform_4, window_bounds = array<i64: 1, 1>}, {transform_indices = @transform_5, window_bounds = array<i64: 256, 1>}]} {
    %c0 = arith.constant 0 : index
    %c0_0 = arith.constant 0 : index
    %0 = vector.load %arg1[%c0, %c0_0] : memref<256x32xf32, #tpu.memory_space<vmem>>, vector<256x32xf32>
    %c0_1 = arith.constant 0 : index
    %c0_2 = arith.constant 0 : index
    %1 = vector.load %arg2[%c0_1, %c0_2] : memref<32x32xf32, #tpu.memory_space<vmem>>, vector<32x32xf32>
    %cst = arith.constant dense<0.000000e+00> : vector<256x32xf32>
    %2 = tpu.matmul %0, %1, %cst {dimension_numbers = #tpu.dot_dimension_numbers<[1], [0], [0], [1], [0, 0, 1, 1], [], []>} : vector<256x32xf32>, vector<32x32xf32>, vector<256x32xf32> -> vector<256x32xf32>
    %c0_3 = arith.constant 0 : index
    %c0_4 = arith.constant 0 : index
    %3 = vector.load %arg3[%c0_3, %c0_4] : memref<1x32xf32, #tpu.memory_space<vmem>>, vector<1x32xf32>
    %4 = vector.broadcast %3 : vector<1x32xf32> to vector<256x32xf32>
    %5 = arith.addf %2, %4 : vector<256x32xf32>
    %cst_5 = arith.constant 0.000000e+00 : f32
    %6 = vector.broadcast %cst_5 : f32 to vector<256x32xf32>
    %7 = arith.maximumf %5, %6 : vector<256x32xf32>
    %c0_6 = arith.constant 0 : index
    %c0_7 = arith.constant 0 : index
    %8 = vector.load %arg4[%c0_6, %c0_7] : memref<1x32xf32, #tpu.memory_space<vmem>>, vector<1x32xf32>
    %9 = vector.broadcast %8 : vector<1x32xf32> to vector<256x32xf32>
    %10 = arith.mulf %7, %9 : vector<256x32xf32>
    %cst_8 = arith.constant dense<0.000000e+00> : vector<256xf32>
    %11 = vector.multi_reduction <add>, %10, %cst_8 [1] : vector<256x32xf32> to vector<256xf32>
    %12 = vector.shape_cast %11 : vector<256xf32> to vector<256x1xf32>
    %c0_9 = arith.constant 0 : index
    %c0_10 = arith.constant 0 : index
    %13 = memref.load %arg5[%c0_9, %c0_10] : memref<1x1xf32, #tpu.memory_space<smem>>
    %14 = vector.broadcast %13 : f32 to vector<256x1xf32>
    %15 = arith.addf %12, %14 : vector<256x1xf32>
    %c0_11 = arith.constant 0 : index
    %c0_12 = arith.constant 0 : index
    %16 = vector.load %arg6[%c0_11, %c0_12] : memref<256x1xf32, #tpu.memory_space<vmem>>, vector<256x1xf32>
    tpu.vector_store %arg6[%c0_11, %c0_12], %15 {strides = array<i32>} : memref<256x1xf32, #tpu.memory_space<vmem>>, vector<256x1xf32>,
    return
  }
  func.func @transform_0(%arg0: i32) -> (i32, i32) {
    %c0_i32 = arith.constant 0 : i32
    %c0_i32_0 = arith.constant 0 : i32
    return %arg0, %c0_i32 : i32, i32
  }
  func.func @transform_1(%arg0: i32) -> (i32, i32) {
    %c0_i32 = arith.constant 0 : i32
    %c0_i32_0 = arith.constant 0 : i32
    %c0_i32_1 = arith.constant 0 : i32
    return %c0_i32, %c0_i32_0 : i32, i32
  }
  func.func @transform_2(%arg0: i32) -> (i32, i32) {
    %c0_i32 = arith.constant 0 : i32
    %c0_i32_0 = arith.constant 0 : i32
    %c0_i32_1 = arith.constant 0 : i32
    return %c0_i32, %c0_i32_0 : i32, i32
  }
  func.func @transform_3(%arg0: i32) -> (i32, i32) {
    %c0_i32 = arith.constant 0 : i32
    %c0_i32_0 = arith.constant 0 : i32
    %c0_i32_1 = arith.constant 0 : i32
    return %c0_i32, %c0_i32_0 : i32, i32
  }
  func.func @transform_4(%arg0: i32) -> (i32, i32) {
    %c0_i32 = arith.constant 0 : i32
    %c0_i32_0 = arith.constant 0 : i32
    %c0_i32_1 = arith.constant 0 : i32
    return %c0_i32, %c0_i32_0 : i32, i32
  }
  func.func @transform_5(%arg0: i32) -> (i32, i32) {
    %c0_i32 = arith.constant 0 : i32
    %c0_i32_0 = arith.constant 0 : i32
    return %arg0, %c0_i32 : i32, i32
  }
}

</mosaic_0001>

<llo_original>
// kernel: tpu_custom_call.1
$region0: #{tpu_custom_call.1}
  #allocation0 [shape = 'u32[]', space=smem, size = 0x4, offset = 0x4, fixed_abs, tag = 'smem constant byte address 0x4 - core index']
  #allocation1 [shape = 'u32[72,128]{1,0:T(1,128)}', space=vmem, size = 0x9000, scoped, tag = 'internal scratch']
  #allocation2 [shape = 'f32[1,1]{1,0:T(1,128)S(6)}', space=smem, size = 0x200, scoped, tag = 'scoped memory for tpu_custom_call.1']
  %s0 = inlined_call_operand.vmem [shape: f32[512,32], index: 0, kind: input, shape index: {}]
  %s1 = inlined_call_operand.vmem [shape: f32[32,32], index: 1, kind: input, shape index: {}]
  %s2 = inlined_call_operand.vmem [shape: f32[1,32], index: 2, kind: input, shape index: {}]
  %s3 = inlined_call_operand.vmem [shape: f32[1,32], index: 3, kind: input, shape index: {}]
  %s4 = inlined_call_operand.<no memory space> [shape: f32[1,1], index: 4, kind: input, shape index: {}]
  %s5 = inlined_call_operand.vmem [shape: f32[512,1], index: 5, kind: output, shape index: {}]
  %s6 = sld [smem:[#allocation0]]
  $region53: #{tpu_custom_call.1} parent=0
    _
  %s8 = ssub.s32 1, %s6
  %s9 = scalar_select 0, %s8, %s6
  %10 = sst [smem:[#allocation2]] %s4
  loop: start=0, step=1, limit=4
  $region2: #{tpu_custom_call.1} parent=0 // loop_pre_header
    _
  $region3: #{tpu_custom_call.1} parent=0 // loop_header
    %s12 = sphi 0, %s16
    %p13 = scmp.ge.s32.totalorder %s12, 4
    %s22 = sphi 0, %s24
    %s25 = sphi 0, %s22
    %s26 = sphi 0, %s25
    %s42 = sphi 0, %s26
    %s46 = sphi 0, %s46
    %s48 = sphi 0, %s46
    %s49 = sphi 0, %s48
    %s63 = sphi 0, %s49
    %s67 = sphi 0, %s67
    %s69 = sphi 0, %s67
    %s70 = sphi 0, %s69
    %s84 = sphi 0, %s70
    %s88 = sphi 0, %s88
    %s90 = sphi 0, %s88
    %s91 = sphi 0, %s90
    %s105 = sphi 0, %s91
    %s109 = sphi 0, %s109
    %s111 = sphi 0, %s109
    %s112 = sphi 0, %s111
    %s126 = sphi 0, %s112
    %s132 = sphi 0, %s134
    %s135 = sphi 0, %s132
    %s136 = sphi 0, %s135
    %s152 = sphi 0, %s136
  $region4: #{tpu_custom_call.1} parent=0 // loop_header_branch
    %15 = sbr.rel (%p13) target = $region8
  $region5: #{tpu_custom_call.1} parent=0 // loop_body
    %s17 = ssub.s32 %s12, 1
    %s18 = ssub.s32 %s12, 2
    %s19 = sadd.s32 %s12, 1
    %s20 = ssub.s32 %s12, %s19
    %p21 = scmp.eq.s32.totalorder %s20, 0
    %s23 = sadd.s32 %s22, 1
    %s24 = scalar_select %p21, %s22, %s23
    %p27 = pneg %p21
    %p28 = scmp.eq.s32.totalorder %s12, 1
    %p29 = por %p27, %p28
    %p30 = scmp.ne.s32.totalorder %s22, %s25
    %p31 = scmp.eq.s32.totalorder %s12, 0
    %p32 = por %p30, %p31
    %p33 = scmp.ne.s32.totalorder %s22, %s25
    %p34 = scmp.eq.s32.totalorder %s17, 1
    %p35 = por %p33, %p34
    %p36 = scmp.ne.s32.totalorder %s25, %s26
    %p37 = scmp.eq.s32.totalorder %s17, 0
    %p38 = por %p36, %p37
    %p39 = scmp.ne.s32.totalorder %s25, %s26
    %p40 = scmp.eq.s32.totalorder %s18, 1
    %p41 = por %p39, %p40
    %p43 = scmp.ne.s32.totalorder %s26, %s42
    %p44 = scmp.eq.s32.totalorder %s18, 0
    %p45 = por %p43, %p44
    %s47 = sadd.s32 %s46, 1
    %p50 = scmp.eq.s32.totalorder %s12, 1
    %p51 = scmp.ne.s32.totalorder %s46, %s48
    %p52 = scmp.eq.s32.totalorder %s12, 0
    %p53 = por %p51, %p52
    %p54 = scmp.ne.s32.totalorder %s46, %s48
    %p55 = scmp.eq.s32.totalorder %s17, 1
    %p56 = por %p54, %p55
    %p57 = scmp.ne.s32.totalorder %s48, %s49
    %p58 = scmp.eq.s32.totalorder %s17, 0
    %p59 = por %p57, %p58
    %p60 = scmp.ne.s32.totalorder %s48, %s49
    %p61 = scmp.eq.s32.totalorder %s18, 1
    %p62 = por %p60, %p61
    %p64 = scmp.ne.s32.totalorder %s49, %s63
    %p65 = scmp.eq.s32.totalorder %s18, 0
    %p66 = por %p64, %p65
    %s68 = sadd.s32 %s67, 1
    %p71 = scmp.eq.s32.totalorder %s12, 1
    %p72 = scmp.ne.s32.totalorder %s67, %s69
    %p73 = scmp.eq.s32.totalorder %s12, 0
    %p74 = por %p72, %p73
    %p75 = scmp.ne.s32.totalorder %s67, %s69
    %p76 = scmp.eq.s32.totalorder %s17, 1
    %p77 = por %p75, %p76
    %p78 = scmp.ne.s32.totalorder %s69, %s70
    %p79 = scmp.eq.s32.totalorder %s17, 0
    %p80 = por %p78, %p79
    %p81 = scmp.ne.s32.totalorder %s69, %s70
    %p82 = scmp.eq.s32.totalorder %s18, 1
    %p83 = por %p81, %p82
    %p85 = scmp.ne.s32.totalorder %s70, %s84
    %p86 = scmp.eq.s32.totalorder %s18, 0
    %p87 = por %p85, %p86
    %s89 = sadd.s32 %s88, 1
    %p92 = scmp.eq.s32.totalorder %s12, 1
    %p93 = scmp.ne.s32.totalorder %s88, %s90
    %p94 = scmp.eq.s32.totalorder %s12, 0
    %p95 = por %p93, %p94
    %p96 = scmp.ne.s32.totalorder %s88, %s90
    %p97 = scmp.eq.s32.totalorder %s17, 1
    %p98 = por %p96, %p97
    %p99 = scmp.ne.s32.totalorder %s90, %s91
    %p100 = scmp.eq.s32.totalorder %s17, 0
    %p101 = por %p99, %p100
    %p102 = scmp.ne.s32.totalorder %s90, %s91
    %p103 = scmp.eq.s32.totalorder %s18, 1
    %p104 = por %p102, %p103
    %p106 = scmp.ne.s32.totalorder %s91, %s105
    %p107 = scmp.eq.s32.totalorder %s18, 0
    %p108 = por %p106, %p107
    %s110 = sadd.s32 %s109, 1
    %p113 = scmp.eq.s32.totalorder %s12, 1
    %p114 = scmp.ne.s32.totalorder %s109, %s111
    %p115 = scmp.eq.s32.totalorder %s12, 0
    %p116 = por %p114, %p115
    %p117 = scmp.ne.s32.totalorder %s109, %s111
    %p118 = scmp.eq.s32.totalorder %s17, 1
    %p119 = por %p117, %p118
    %p120 = scmp.ne.s32.totalorder %s111, %s112
    %p121 = scmp.eq.s32.totalorder %s17, 0
    %p122 = por %p120, %p121
    %p123 = scmp.ne.s32.totalorder %s111, %s112
    %p124 = scmp.eq.s32.totalorder %s18, 1
    %p125 = por %p123, %p124
    %p127 = scmp.ne.s32.totalorder %s112, %s126
    %p128 = scmp.eq.s32.totalorder %s18, 0
    %p129 = por %p127, %p128
    %s130 = ssub.s32 %s12, %s19
    %p131 = scmp.eq.s32.totalorder %s130, 0
    %s133 = sadd.s32 %s132, 1
    %s134 = scalar_select %p131, %s132, %s133
    %p137 = pneg %p131
    %p138 = scmp.eq.s32.totalorder %s12, 1
    %p139 = por %p137, %p138
    %p140 = scmp.ne.s32.totalorder %s132, %s135
    %p141 = scmp.eq.s32.totalorder %s12, 0
    %p142 = por %p140, %p141
    %p143 = scmp.ne.s32.totalorder %s132, %s135
    %p144 = scmp.eq.s32.totalorder %s17, 1
    %p145 = por %p143, %p144
    %p146 = scmp.ne.s32.totalorder %s135, %s136
    %p147 = scmp.eq.s32.totalorder %s17, 0
    %p148 = por %p146, %p147
    %p149 = scmp.ne.s32.totalorder %s135, %s136
    %p150 = scmp.eq.s32.totalorder %s18, 1
    %p151 = por %p149, %p150
    %p153 = scmp.ne.s32.totalorder %s136, %s152
    %p154 = scmp.eq.s32.totalorder %s18, 0
    %p155 = por %p153, %p154
    %p156 = scmp.le.s32.totalorder 1, %s12
    %p157 = scmp.lt.s32.totalorder %s12, 3
    %p158 = pnand %p156, %p157
    %p159 = pneg %p158
    // Predicated region
    $region9: #{tpu_custom_call.1} parent=5 // pred_check
      _
    $region10: #{tpu_custom_call.1} parent=5 // pred_check_branch
      %161 = sbr.rel (%p158) target = $region12
    $region11: #{tpu_custom_call.1} parent=5 // pred_region
      %s162 = ssub.s32 %s12, 1
      // Predicated region
      $region13: #{tpu_custom_call.1} parent=11 // pred_check
        %p163 = pneg %p59
      $region14: #{tpu_custom_call.1} parent=11 // pred_check_branch
        %165 = sbr.rel (%p163) target = $region16
      $region15: #{tpu_custom_call.1} parent=11 // pred_region
        _
      $region16: #{tpu_custom_call.1} parent=11 // pred_fallthru
        _
      // Predicated region
      $region17: #{tpu_custom_call.1} parent=11 // pred_check
        %p166 = pneg %p80
      $region18: #{tpu_custom_call.1} parent=11 // pred_check_branch
        %168 = sbr.rel (%p166) target = $region20
      $region19: #{tpu_custom_call.1} parent=11 // pred_region
        _
      $region20: #{tpu_custom_call.1} parent=11 // pred_fallthru
        _
      // Predicated region
      $region21: #{tpu_custom_call.1} parent=11 // pred_check
        %p169 = pneg %p101
      $region22: #{tpu_custom_call.1} parent=11 // pred_check_branch
        %171 = sbr.rel (%p169) target = $region24
      $region23: #{tpu_custom_call.1} parent=11 // pred_region
        _
      $region24: #{tpu_custom_call.1} parent=11 // pred_fallthru
        _
      // Predicated region
      $region25: #{tpu_custom_call.1} parent=11 // pred_check
        %p172 = pneg %p122
      $region26: #{tpu_custom_call.1} parent=11 // pred_check_branch
        %174 = sbr.rel (%p172) target = $region28
      $region27: #{tpu_custom_call.1} parent=11 // pred_region
        _
      $region28: #{tpu_custom_call.1} parent=11 // pred_fallthru
        _
    $region12: #{tpu_custom_call.1} parent=5 // pred_fallthru
      _
    %p175 = scmp.lt.s32.totalorder %s12, 2
    // Predicated region
    $region29: #{tpu_custom_call.1} parent=5 // pred_check
      %p176 = pneg %p175
    $region30: #{tpu_custom_call.1} parent=5 // pred_check_branch
      %178 = sbr.rel (%p176) target = $region32
    $region31: #{tpu_custom_call.1} parent=5 // pred_region
      // Predicated region
      $region33: #{tpu_custom_call.1} parent=31 // pred_check
        %p179 = pneg %p32
      $region34: #{tpu_custom_call.1} parent=31 // pred_check_branch
        %181 = sbr.rel (%p179) target = $region36
      $region35: #{tpu_custom_call.1} parent=31 // pred_region
        %s182 = smul.u32 32, %s12
        %p183 = scmp.lt.s32.totalorder %s182, 63
        %s184 = scalar_select %p183, %s182, 63
        %s185 = smul.addr %s184, 8
        %s186 = scalar_lea.vmem %s0, %s185
        %s187 = smul.u32 32, %s12
      $region36: #{tpu_custom_call.1} parent=31 // pred_fallthru
        _
    $region32: #{tpu_custom_call.1} parent=5 // pred_fallthru
      _
    %p188 = scmp.le.s32.totalorder 1, %s12
    %p189 = scmp.lt.s32.totalorder %s12, 3
    %p190 = pnand %p188, %p189
    %p191 = pneg %p190
    // Predicated region
    $region37: #{tpu_custom_call.1} parent=5 // pred_check
      _
    $region38: #{tpu_custom_call.1} parent=5 // pred_check_branch
      %193 = sbr.rel (%p190) target = $region40
    $region39: #{tpu_custom_call.1} parent=5 // pred_region
      %s194 = ssub.s32 %s12, 1
      %s195 = smul.u32 32, %s17
      %p196 = scmp.lt.s32.totalorder %s195, 63
      %s197 = scalar_select %p196, %s195, 63
      %s198 = smul.addr %s197, 8
      %s199 = scalar_lea.vmem %s0, %s198
      %p200 = pneg %p38
      %p201 = pneg %p35
      %p202 = pneg %p59
      %p203 = pneg %p56
      %p204 = pneg %p80
      %p205 = pneg %p77
      %p206 = pneg %p101
      %p207 = pneg %p98
      %p208 = pneg %p122
      %p209 = pneg %p119
      %p210 = pneg %p148
      %p211 = pneg %p145
      %s212 = smul.u32 32, %s17
      %p213 = scmp.lt.s32.totalorder %s212, 63
      %s214 = scalar_select %p213, %s212, 63
      %s215 = smul.addr %s214, 8
      %s216 = scalar_lea.vmem %s5, %s215
      %s217 = smul.u32 32, %s17
      %p218 = scmp.lt.s32.totalorder %s217, 63
      %s219 = scalar_select %p218, %s217, 63
      %s220 = smul.addr %s219, 8
      %s221 = scalar_lea.vmem %s0, %s220
      %s222 = smul.u32 32, %s17
      %s223 = smul.u32 32, %s17
      %p224 = scmp.lt.s32.totalorder %s223, 63
      %s225 = scalar_select %p224, %s223, 63
      %s226 = smul.addr %s225, 8
      %s227 = scalar_lea.vmem %s5, %s226
      %s228 = smul.u32 32, %s17
      %v229 = vld [vmem:[%s221] sm:$0xff]
      %v230 = vld [vmem:[%s221 + $0x8] sm:$0xff]
      %v231 = vld [vmem:[%s221 + $0x10] sm:$0xff]
      %v232 = vld [vmem:[%s221 + $0x18] sm:$0xff]
      %v233 = vld [vmem:[%s221 + $0x20] sm:$0xff]
      %v234 = vld [vmem:[%s221 + $0x28] sm:$0xff]
      %v235 = vld [vmem:[%s221 + $0x30] sm:$0xff]
      %v236 = vld [vmem:[%s221 + $0x38] sm:$0xff]
      %v237 = vld [vmem:[%s221 + $0x40] sm:$0xff]
      %v238 = vld [vmem:[%s221 + $0x48] sm:$0xff]
      %v239 = vld [vmem:[%s221 + $0x50] sm:$0xff]
      %v240 = vld [vmem:[%s221 + $0x58] sm:$0xff]
      %v241 = vld [vmem:[%s221 + $0x60] sm:$0xff]
      %v242 = vld [vmem:[%s221 + $0x68] sm:$0xff]
      %v243 = vld [vmem:[%s221 + $0x70] sm:$0xff]
      %v244 = vld [vmem:[%s221 + $0x78] sm:$0xff]
      %v245 = vld [vmem:[%s221 + $0x80] sm:$0xff]
      %v246 = vld [vmem:[%s221 + $0x88] sm:$0xff]
      %v247 = vld [vmem:[%s221 + $0x90] sm:$0xff]
      %v248 = vld [vmem:[%s221 + $0x98] sm:$0xff]
      %v249 = vld [vmem:[%s221 + $0xa0] sm:$0xff]
      %v250 = vld [vmem:[%s221 + $0xa8] sm:$0xff]
      %v251 = vld [vmem:[%s221 + $0xb0] sm:$0xff]
      %v252 = vld [vmem:[%s221 + $0xb8] sm:$0xff]
      %v253 = vld [vmem:[%s221 + $0xc0] sm:$0xff]
      %v254 = vld [vmem:[%s221 + $0xc8] sm:$0xff]
      %v255 = vld [vmem:[%s221 + $0xd0] sm:$0xff]
      %v256 = vld [vmem:[%s221 + $0xd8] sm:$0xff]
      %v257 = vld [vmem:[%s221 + $0xe0] sm:$0xff]
      %v258 = vld [vmem:[%s221 + $0xe8] sm:$0xff]
      %v259 = vld [vmem:[%s221 + $0xf0] sm:$0xff]
      %v260 = vld [vmem:[%s221 + $0xf8] sm:$0xff]
      %v261 = vld [vmem:[%s1] sm:$0xff]
      %v262 = vld [vmem:[%s1 + $0x8] sm:$0xff]
      %v263 = vld [vmem:[%s1 + $0x10] sm:$0xff]
      %v264 = vld [vmem:[%s1 + $0x18] sm:$0xff]
      %v265 = vld [vmem:[%s2] sm:$0x1]
      %v267 = vperm.slane %v265, 0
      %vm269 = vcmask 261120
      %v271 = vsel %vm269, %v229, 0
      %v274 = vsel %vm269, %v230, 0
      %v277 = vsel %vm269, %v231, 0
      %v280 = vsel %vm269, %v232, 0
      %v283 = vsel %vm269, %v233, 0
      %v286 = vsel %vm269, %v234, 0
      %v289 = vsel %vm269, %v235, 0
      %v292 = vsel %vm269, %v236, 0
      %v295 = vsel %vm269, %v237, 0
      %v298 = vsel %vm269, %v238, 0
      %v301 = vsel %vm269, %v239, 0
      %v304 = vsel %vm269, %v240, 0
      %v307 = vsel %vm269, %v241, 0
      %v310 = vsel %vm269, %v242, 0
      %v313 = vsel %vm269, %v243, 0
      %v316 = vsel %vm269, %v244, 0
      %v319 = vsel %vm269, %v245, 0
      %v322 = vsel %vm269, %v246, 0
      %v325 = vsel %vm269, %v247, 0
      %v328 = vsel %vm269, %v248, 0
      %v331 = vsel %vm269, %v249, 0
      %v334 = vsel %vm269, %v250, 0
      %v337 = vsel %vm269, %v251, 0
      %v340 = vsel %vm269, %v252, 0
      %v343 = vsel %vm269, %v253, 0
      %v346 = vsel %vm269, %v254, 0
      %v349 = vsel %vm269, %v255, 0
      %v352 = vsel %vm269, %v256, 0
      %v355 = vsel %vm269, %v257, 0
      %v358 = vsel %vm269, %v258, 0
      %v361 = vsel %vm269, %v259, 0
      %v364 = vsel %vm269, %v260, 0
      %366 = vmatpush.msra.mxu0 0.0
      %367 = vmatpush.msra.mxu0 0.0
      %368 = vmatpush.msra.mxu0 0.0
      %369 = vmatpush.msra.mxu0 0.0
      %370 = vmatpush.msra.mxu0 0.0
      %371 = vmatpush.msra.mxu0 0.0
      %372 = vmatpush.msra.mxu0 0.0
      %373 = vmatpush.msra.mxu0 0.0
      %374 = vmatpush.msra.mxu0 0.0
      %375 = vmatpush.msra.mxu0 0.0
      %376 = vmatpush.msra.mxu0 0.0
      %377 = vmatpush.msra.mxu0 0.0
      %378 = vmatpush.msra.mxu0 %v264
      %379 = vmatpush.msra.mxu0 %v263
      %380 = vmatpush.msra.mxu0 %v262
      %381 = vmatpush.msra.mxu0 %v261
      %382 = vmatmul.f32.gmra.mxu0 %v271
      %v383 = vpop.f32.mrf.mxu0
      %v384 = vadd.f32 %v267, %v383
      %385 = vmatmul.f32.gmra.mxu0 %v274
      %v386 = vpop.f32.mrf.mxu0
      %v387 = vadd.f32 %v267, %v386
      %388 = vmatmul.f32.gmra.mxu0 %v277
      %v389 = vpop.f32.mrf.mxu0
      %v390 = vadd.f32 %v267, %v389
      %391 = vmatmul.f32.gmra.mxu0 %v280
      %v392 = vpop.f32.mrf.mxu0
      %v393 = vadd.f32 %v267, %v392
      %394 = vmatmul.f32.gmra.mxu0 %v283
      %v395 = vpop.f32.mrf.mxu0
      %v396 = vadd.f32 %v267, %v395
      %397 = vmatmul.f32.gmra.mxu0 %v286
      %v398 = vpop.f32.mrf.mxu0
      %v399 = vadd.f32 %v267, %v398
      %400 = vmatmul.f32.gmra.mxu0 %v289
      %v401 = vpop.f32.mrf.mxu0
      %v402 = vadd.f32 %v267, %v401
      %403 = vmatmul.f32.gmra.mxu0 %v292
      %v404 = vpop.f32.mrf.mxu0
      %v405 = vadd.f32 %v267, %v404
      %406 = vmatmul.f32.gmra.mxu0 %v295
      %v407 = vpop.f32.mrf.mxu0
      %v408 = vadd.f32 %v267, %v407
      %409 = vmatmul.f32.gmra.mxu0 %v298
      %v410 = vpop.f32.mrf.mxu0
      %v411 = vadd.f32 %v267, %v410
      %412 = vmatmul.f32.gmra.mxu0 %v301
      %v413 = vpop.f32.mrf.mxu0
      %v414 = vadd.f32 %v267, %v413
      %415 = vmatmul.f32.gmra.mxu0 %v304
      %v416 = vpop.f32.mrf.mxu0
      %v417 = vadd.f32 %v267, %v416
      %418 = vmatmul.f32.gmra.mxu0 %v307
      %v419 = vpop.f32.mrf.mxu0
      %v420 = vadd.f32 %v267, %v419
      %421 = vmatmul.f32.gmra.mxu0 %v310
      %v422 = vpop.f32.mrf.mxu0
      %v423 = vadd.f32 %v267, %v422
      %424 = vmatmul.f32.gmra.mxu0 %v313
      %v425 = vpop.f32.mrf.mxu0
      %v426 = vadd.f32 %v267, %v425
      %427 = vmatmul.f32.gmra.mxu0 %v316
      %v428 = vpop.f32.mrf.mxu0
      %v429 = vadd.f32 %v267, %v428
      %430 = vmatmul.f32.gmra.mxu0 %v319
      %v431 = vpop.f32.mrf.mxu0
      %v432 = vadd.f32 %v267, %v431
      %433 = vmatmul.f32.gmra.mxu0 %v322
      %v434 = vpop.f32.mrf.mxu0
      %v435 = vadd.f32 %v267, %v434
      %436 = vmatmul.f32.gmra.mxu0 %v325
      %v437 = vpop.f32.mrf.mxu0
      %v438 = vadd.f32 %v267, %v437
      %439 = vmatmul.f32.gmra.mxu0 %v328
      %v440 = vpop.f32.mrf.mxu0
      %v441 = vadd.f32 %v267, %v440
      %442 = vmatmul.f32.gmra.mxu0 %v331
      %v443 = vpop.f32.mrf.mxu0
      %v444 = vadd.f32 %v267, %v443
      %445 = vmatmul.f32.gmra.mxu0 %v334
      %v446 = vpop.f32.mrf.mxu0
      %v447 = vadd.f32 %v267, %v446
      %448 = vmatmul.f32.gmra.mxu0 %v337
      %v449 = vpop.f32.mrf.mxu0
      %v450 = vadd.f32 %v267, %v449
      %451 = vmatmul.f32.gmra.mxu0 %v340
      %v452 = vpop.f32.mrf.mxu0
      %v453 = vadd.f32 %v267, %v452
      %454 = vmatmul.f32.gmra.mxu0 %v343
      %v455 = vpop.f32.mrf.mxu0
      %v456 = vadd.f32 %v267, %v455
      %457 = vmatmul.f32.gmra.mxu0 %v346
      %v458 = vpop.f32.mrf.mxu0
      %v459 = vadd.f32 %v267, %v458
      %460 = vmatmul.f32.gmra.mxu0 %v349
      %v461 = vpop.f32.mrf.mxu0
      %v462 = vadd.f32 %v267, %v461
      %463 = vmatmul.f32.gmra.mxu0 %v352
      %v464 = vpop.f32.mrf.mxu0
      %v465 = vadd.f32 %v267, %v464
      %466 = vmatmul.f32.gmra.mxu0 %v355
      %v467 = vpop.f32.mrf.mxu0
      %v468 = vadd.f32 %v267, %v467
      %469 = vmatmul.f32.gmra.mxu0 %v358
      %v470 = vpop.f32.mrf.mxu0
      %v471 = vadd.f32 %v267, %v470
      %472 = vmatmul.f32.gmra.mxu0 %v361
      %v473 = vpop.f32.mrf.mxu0
      %v474 = vadd.f32 %v267, %v473
      %475 = vmatmul.f32.gmra.mxu0 %v364
      %v476 = vpop.f32.mrf.mxu0
      %v477 = vadd.f32 %v267, %v476
      %478 = vdwg.mxu0
      %v479 = vmax.f32 %v384, 0.0
      %v480 = vmax.f32 %v387, 0.0
      %v481 = vmax.f32 %v390, 0.0
      %v482 = vmax.f32 %v393, 0.0
      %v483 = vmax.f32 %v396, 0.0
      %v484 = vmax.f32 %v399, 0.0
      %v485 = vmax.f32 %v402, 0.0
      %v486 = vmax.f32 %v405, 0.0
      %v487 = vmax.f32 %v408, 0.0
      %v488 = vmax.f32 %v411, 0.0
      %v489 = vmax.f32 %v414, 0.0
      %v490 = vmax.f32 %v417, 0.0
      %v491 = vmax.f32 %v420, 0.0
      %v492 = vmax.f32 %v423, 0.0
      %v493 = vmax.f32 %v426, 0.0
      %v494 = vmax.f32 %v429, 0.0
      %v495 = vmax.f32 %v432, 0.0
      %v496 = vmax.f32 %v435, 0.0
      %v497 = vmax.f32 %v438, 0.0
      %v498 = vmax.f32 %v441, 0.0
      %v499 = vmax.f32 %v444, 0.0
      %v500 = vmax.f32 %v447, 0.0
      %v501 = vmax.f32 %v450, 0.0
      %v502 = vmax.f32 %v453, 0.0
      %v503 = vmax.f32 %v456, 0.0
      %v504 = vmax.f32 %v459, 0.0
      %v505 = vmax.f32 %v462, 0.0
      %v506 = vmax.f32 %v465, 0.0
      %v507 = vmax.f32 %v468, 0.0
      %v508 = vmax.f32 %v471, 0.0
      %v509 = vmax.f32 %v474, 0.0
      %v510 = vmax.f32 %v477, 0.0
      %v511 = vld [vmem:[%s3] sm:$0x1]
      %v513 = vperm.slane %v511, 0
      %v515 = vmul.f32 %v479, %v513
      %v516 = vmul.f32 %v480, %v513
      %v517 = vmul.f32 %v481, %v513
      %v518 = vmul.f32 %v482, %v513
      %v519 = vmul.f32 %v483, %v513
      %v520 = vmul.f32 %v484, %v513
      %v521 = vmul.f32 %v485, %v513
      %v522 = vmul.f32 %v486, %v513
      %v523 = vmul.f32 %v487, %v513
      %v524 = vmul.f32 %v488, %v513
      %v525 = vmul.f32 %v489, %v513
      %v526 = vmul.f32 %v490, %v513
      %v527 = vmul.f32 %v491, %v513
      %v528 = vmul.f32 %v492, %v513
      %v529 = vmul.f32 %v493, %v513
      %v530 = vmul.f32 %v494, %v513
      %v531 = vmul.f32 %v495, %v513
      %v532 = vmul.f32 %v496, %v513
      %v533 = vmul.f32 %v497, %v513
      %v534 = vmul.f32 %v498, %v513
      %v535 = vmul.f32 %v499, %v513
      %v536 = vmul.f32 %v500, %v513
      %v537 = vmul.f32 %v501, %v513
      %v538 = vmul.f32 %v502, %v513
      %v539 = vmul.f32 %v503, %v513
      %v540 = vmul.f32 %v504, %v513
      %v541 = vmul.f32 %v505, %v513
      %v542 = vmul.f32 %v506, %v513
      %v543 = vmul.f32 %v507, %v513
      %v544 = vmul.f32 %v508, %v513
      %v545 = vmul.f32 %v509, %v513
      %v546 = vmul.f32 %v510, %v513
      %v547 = vsel %vm269, %v515, 0.0
      %548 = vadd.xlane.f32.xlu0 %v547
      %v549 = vpop.xlane.xlu0 %548
      %v550 = vsel %vm269, %v516, 0.0
      %551 = vadd.xlane.f32.xlu0 %v550
      %v552 = vpop.xlane.xlu0 %551
      %v553 = vsel %vm269, %v517, 0.0
      %554 = vadd.xlane.f32.xlu0 %v553
      %v555 = vpop.xlane.xlu0 %554
      %v556 = vsel %vm269, %v518, 0.0
      %557 = vadd.xlane.f32.xlu0 %v556
      %v558 = vpop.xlane.xlu0 %557
      %v559 = vsel %vm269, %v519, 0.0
      %560 = vadd.xlane.f32.xlu0 %v559
      %v561 = vpop.xlane.xlu0 %560
      %v562 = vsel %vm269, %v520, 0.0
      %563 = vadd.xlane.f32.xlu0 %v562
      %v564 = vpop.xlane.xlu0 %563
      %v565 = vsel %vm269, %v521, 0.0
      %566 = vadd.xlane.f32.xlu0 %v565
      %v567 = vpop.xlane.xlu0 %566
      %v568 = vsel %vm269, %v522, 0.0
      %569 = vadd.xlane.f32.xlu0 %v568
      %v570 = vpop.xlane.xlu0 %569
      %v571 = vsel %vm269, %v523, 0.0
      %572 = vadd.xlane.f32.xlu0 %v571
      %v573 = vpop.xlane.xlu0 %572
      %v574 = vsel %vm269, %v524, 0.0
      %575 = vadd.xlane.f32.xlu0 %v574
      %v576 = vpop.xlane.xlu0 %575
      %v577 = vsel %vm269, %v525, 0.0
      %578 = vadd.xlane.f32.xlu0 %v577
      %v579 = vpop.xlane.xlu0 %578
      %v580 = vsel %vm269, %v526, 0.0
      %581 = vadd.xlane.f32.xlu0 %v580
      %v582 = vpop.xlane.xlu0 %581
      %v583 = vsel %vm269, %v527, 0.0
      %584 = vadd.xlane.f32.xlu0 %v583
      %v585 = vpop.xlane.xlu0 %584
      %v586 = vsel %vm269, %v528, 0.0
      %587 = vadd.xlane.f32.xlu0 %v586
      %v588 = vpop.xlane.xlu0 %587
      %v589 = vsel %vm269, %v529, 0.0
      %590 = vadd.xlane.f32.xlu0 %v589
      %v591 = vpop.xlane.xlu0 %590
      %v592 = vsel %vm269, %v530, 0.0
      %593 = vadd.xlane.f32.xlu0 %v592
      %v594 = vpop.xlane.xlu0 %593
      %v595 = vsel %vm269, %v531, 0.0
      %596 = vadd.xlane.f32.xlu0 %v595
      %v597 = vpop.xlane.xlu0 %596
      %v598 = vsel %vm269, %v532, 0.0
      %599 = vadd.xlane.f32.xlu0 %v598
      %v600 = vpop.xlane.xlu0 %599
      %v601 = vsel %vm269, %v533, 0.0
      %602 = vadd.xlane.f32.xlu0 %v601
      %v603 = vpop.xlane.xlu0 %602
      %v604 = vsel %vm269, %v534, 0.0
      %605 = vadd.xlane.f32.xlu0 %v604
      %v606 = vpop.xlane.xlu0 %605
      %v607 = vsel %vm269, %v535, 0.0
      %608 = vadd.xlane.f32.xlu0 %v607
      %v609 = vpop.xlane.xlu0 %608
      %v610 = vsel %vm269, %v536, 0.0
      %611 = vadd.xlane.f32.xlu0 %v610
      %v612 = vpop.xlane.xlu0 %611
      %v613 = vsel %vm269, %v537, 0.0
      %614 = vadd.xlane.f32.xlu0 %v613
      %v615 = vpop.xlane.xlu0 %614
      %v616 = vsel %vm269, %v538, 0.0
      %617 = vadd.xlane.f32.xlu0 %v616
      %v618 = vpop.xlane.xlu0 %617
      %v619 = vsel %vm269, %v539, 0.0
      %620 = vadd.xlane.f32.xlu0 %v619
      %v621 = vpop.xlane.xlu0 %620
      %v622 = vsel %vm269, %v540, 0.0
      %623 = vadd.xlane.f32.xlu0 %v622
      %v624 = vpop.xlane.xlu0 %623
      %v625 = vsel %vm269, %v541, 0.0
      %626 = vadd.xlane.f32.xlu0 %v625
      %v627 = vpop.xlane.xlu0 %626
      %v628 = vsel %vm269, %v542, 0.0
      %629 = vadd.xlane.f32.xlu0 %v628
      %v630 = vpop.xlane.xlu0 %629
      %v631 = vsel %vm269, %v543, 0.0
      %632 = vadd.xlane.f32.xlu0 %v631
      %v633 = vpop.xlane.xlu0 %632
      %v634 = vsel %vm269, %v544, 0.0
      %635 = vadd.xlane.f32.xlu0 %v634
      %v636 = vpop.xlane.xlu0 %635
      %v637 = vsel %vm269, %v545, 0.0
      %638 = vadd.xlane.f32.xlu0 %v637
      %v639 = vpop.xlane.xlu0 %638
      %v640 = vsel %vm269, %v546, 0.0
      %641 = vadd.xlane.f32.xlu0 %v640
      %v642 = vpop.xlane.xlu0 %641
      %s643 = sld [smem:[#allocation2]]
      %v644 = vstv %s643
      %v645 = vadd.f32 %v549, %v644
      %v646 = vadd.f32 %v552, %v644
      %v647 = vadd.f32 %v555, %v644
      %v648 = vadd.f32 %v558, %v644
      %v649 = vadd.f32 %v561, %v644
      %v650 = vadd.f32 %v564, %v644
      %v651 = vadd.f32 %v567, %v644
      %v652 = vadd.f32 %v570, %v644
      %v653 = vadd.f32 %v573, %v644
      %v654 = vadd.f32 %v576, %v644
      %v655 = vadd.f32 %v579, %v644
      %v656 = vadd.f32 %v582, %v644
      %v657 = vadd.f32 %v585, %v644
      %v658 = vadd.f32 %v588, %v644
      %v659 = vadd.f32 %v591, %v644
      %v660 = vadd.f32 %v594, %v644
      %v661 = vadd.f32 %v597, %v644
      %v662 = vadd.f32 %v600, %v644
      %v663 = vadd.f32 %v603, %v644
      %v664 = vadd.f32 %v606, %v644
      %v665 = vadd.f32 %v609, %v644
      %v666 = vadd.f32 %v612, %v644
      %v667 = vadd.f32 %v615, %v644
      %v668 = vadd.f32 %v618, %v644
      %v669 = vadd.f32 %v621, %v644
      %v670 = vadd.f32 %v624, %v644
      %v671 = vadd.f32 %v627, %v644
      %v672 = vadd.f32 %v630, %v644
      %v673 = vadd.f32 %v633, %v644
      %v674 = vadd.f32 %v636, %v644
      %v675 = vadd.f32 %v639, %v644
      %v676 = vadd.f32 %v642, %v644
      %vm677 = vcmask 7168
      %678 = vst.msk [vmem:[%s227] sm:$0xff] %vm677, %v645
      %679 = vst.msk [vmem:[%s227 + $0x8] sm:$0xff] %vm677, %v646
      %680 = vst.msk [vmem:[%s227 + $0x10] sm:$0xff] %vm677, %v647
      %681 = vst.msk [vmem:[%s227 + $0x18] sm:$0xff] %vm677, %v648
      %682 = vst.msk [vmem:[%s227 + $0x20] sm:$0xff] %vm677, %v649
      %683 = vst.msk [vmem:[%s227 + $0x28] sm:$0xff] %vm677, %v650
      %684 = vst.msk [vmem:[%s227 + $0x30] sm:$0xff] %vm677, %v651
      %685 = vst.msk [vmem:[%s227 + $0x38] sm:$0xff] %vm677, %v652
      %686 = vst.msk [vmem:[%s227 + $0x40] sm:$0xff] %vm677, %v653
      %687 = vst.msk [vmem:[%s227 + $0x48] sm:$0xff] %vm677, %v654
      %688 = vst.msk [vmem:[%s227 + $0x50] sm:$0xff] %vm677, %v655
      %689 = vst.msk [vmem:[%s227 + $0x58] sm:$0xff] %vm677, %v656
      %690 = vst.msk [vmem:[%s227 + $0x60] sm:$0xff] %vm677, %v657
      %691 = vst.msk [vmem:[%s227 + $0x68] sm:$0xff] %vm677, %v658
      %692 = vst.msk [vmem:[%s227 + $0x70] sm:$0xff] %vm677, %v659
      %693 = vst.msk [vmem:[%s227 + $0x78] sm:$0xff] %vm677, %v660
      %694 = vst.msk [vmem:[%s227 + $0x80] sm:$0xff] %vm677, %v661
      %695 = vst.msk [vmem:[%s227 + $0x88] sm:$0xff] %vm677, %v662
      %696 = vst.msk [vmem:[%s227 + $0x90] sm:$0xff] %vm677, %v663
      %697 = vst.msk [vmem:[%s227 + $0x98] sm:$0xff] %vm677, %v664
      %698 = vst.msk [vmem:[%s227 + $0xa0] sm:$0xff] %vm677, %v665
      %699 = vst.msk [vmem:[%s227 + $0xa8] sm:$0xff] %vm677, %v666
      %700 = vst.msk [vmem:[%s227 + $0xb0] sm:$0xff] %vm677, %v667
      %701 = vst.msk [vmem:[%s227 + $0xb8] sm:$0xff] %vm677, %v668
      %702 = vst.msk [vmem:[%s227 + $0xc0] sm:$0xff] %vm677, %v669
      %703 = vst.msk [vmem:[%s227 + $0xc8] sm:$0xff] %vm677, %v670
      %704 = vst.msk [vmem:[%s227 + $0xd0] sm:$0xff] %vm677, %v671
      %705 = vst.msk [vmem:[%s227 + $0xd8] sm:$0xff] %vm677, %v672
      %706 = vst.msk [vmem:[%s227 + $0xe0] sm:$0xff] %vm677, %v673
      %707 = vst.msk [vmem:[%s227 + $0xe8] sm:$0xff] %vm677, %v674
      %708 = vst.msk [vmem:[%s227 + $0xf0] sm:$0xff] %vm677, %v675
      %709 = vst.msk [vmem:[%s227 + $0xf8] sm:$0xff] %vm677, %v676
      %s710 = smul.u32 32, %s17
      %p711 = scmp.lt.s32.totalorder %s710, 63
      %s712 = scalar_select %p711, %s710, 63
      %s713 = smul.addr %s712, 8
      %s714 = scalar_lea.vmem %s5, %s713
      // Predicated region
      $region41: #{tpu_custom_call.1} parent=39 // pred_check
        %p715 = pneg %p145
      $region42: #{tpu_custom_call.1} parent=39 // pred_check_branch
        %717 = sbr.rel (%p715) target = $region44
      $region43: #{tpu_custom_call.1} parent=39 // pred_region
        %s718 = smul.u32 32, %s17
      $region44: #{tpu_custom_call.1} parent=39 // pred_fallthru
        _
    $region40: #{tpu_custom_call.1} parent=5 // pred_fallthru
      _
    %p719 = scmp.le.s32.totalorder 2, %s12
    // Predicated region
    $region45: #{tpu_custom_call.1} parent=5 // pred_check
      %p720 = pneg %p719
    $region46: #{tpu_custom_call.1} parent=5 // pred_check_branch
      %722 = sbr.rel (%p720) target = $region48
    $region47: #{tpu_custom_call.1} parent=5 // pred_region
      %s723 = ssub.s32 %s12, 2
      // Predicated region
      $region49: #{tpu_custom_call.1} parent=47 // pred_check
        %p724 = pneg %p151
      $region50: #{tpu_custom_call.1} parent=47 // pred_check_branch
        %726 = sbr.rel (%p724) target = $region52
      $region51: #{tpu_custom_call.1} parent=47 // pred_region
        %s727 = smul.u32 32, %s18
        %p728 = scmp.lt.s32.totalorder %s727, 63
        %s729 = scalar_select %p728, %s727, 63
        %s730 = smul.addr %s729, 8
        %s731 = scalar_lea.vmem %s5, %s730
      $region52: #{tpu_custom_call.1} parent=47 // pred_fallthru
        _
    $region48: #{tpu_custom_call.1} parent=5 // pred_fallthru
      _
  $region6: #{tpu_custom_call.1} parent=0 // loop_footer
    %s16 = sadd.s32 1, %s12
  $region7: #{tpu_custom_call.1} parent=0 // loop_footer_branch
    %11 = sbr.rel target = $region3
  $region8: #{tpu_custom_call.1} parent=0 // loop_exit
    _

</llo_original>
